<compile_context>
chip_gen: v7x
topology: tpu7x:2x2x1
jax: 0.10.0
libtpu: 0.0.40
codegen_flags: <defaults>
</compile_context>

<pallas_src>
import functools

import jax
import jax.numpy as jnp
from jax.experimental import pallas as pl
from jax.experimental.pallas import tpu as pltpu


def _round_up(x, m):
    return ((x + m - 1) // m) * m


def _cdiv(a, b):
    return (a + b - 1) // b


def _sublane_multiple(dtype):
    # f32 -> 8, bf16 -> 16, int8/fp8 -> 32 (sub-32-bit dtypes pack along sublanes).
    return 8 * max(1, 4 // jnp.dtype(dtype).itemsize)


def _vmem_capacity_bytes():
    try:
        return int(pltpu.get_tpu_info().vmem_capacity_bytes)
    except Exception:
        return 128 * 1024 * 1024  # v5e/v6e size; v7x (64 MiB) reports via get_tpu_info.


def _make_linear_kernel(has_scale, has_bias):
    """Grid = (parallel, parallel, k). f32 accumulate in VMEM scratch; finalize at k==last."""

    def kernel(*refs):
        it = iter(refs)
        x_ref = next(it)
        w_ref = next(it)
        scale_ref = next(it) if has_scale else None
        b_ref = next(it) if has_bias else None
        o_ref = next(it)
        acc_ref = next(it)

        k = pl.program_id(2)

        @pl.when(k == 0)
        def _():
            acc_ref[...] = jnp.zeros_like(acc_ref)

        w = w_ref[...]
        if has_scale:
            # int8 weight -> bf16 on the VPU (hidden under the MXU); the per-output-channel
            # scale is applied once on the f32 accumulator at the last k step.
            w = w.astype(jnp.bfloat16)
        acc_ref[...] += jnp.dot(x_ref[...], w, preferred_element_type=jnp.float32)

        @pl.when(k == pl.num_programs(2) - 1)
        def _():
            out = acc_ref[...]
            if has_scale:
                out = out * scale_ref[...]
            if has_bias:
                out = out + b_ref[...]
            o_ref[...] = out.astype(o_ref.dtype)

    return kernel


def prepare_linear_params(weight, bias=None, *, compute_dtype=jnp.bfloat16,
                          weight_format="plain", k_align=128):
    """One-time (load-time) parameter prep, hoisted out of the hot forward.

    weight: PyTorch layout [out_features, in_features].
    weight_format:
      "plain": cast weight once to compute_dtype (default bf16; full-rate MXU, f32 accum).
      "int8":  per-output-channel symmetric int8 + f32 scale (half the HBM bytes of bf16).
    K is zero-padded once to a multiple of k_align; bias is kept in float32.
    Returns (w_kn, scale_or_None, bias_or_None).
    """
    weight = jnp.asarray(weight)
    n_out, k_in = weight.shape
    w_kn = weight.T  # [K, N]
    kp = _round_up(k_in, k_align)

    if weight_format == "int8":
        w_f32 = w_kn.astype(jnp.float32)
        amax = jnp.max(jnp.abs(w_f32), axis=0)                       # per output channel
        scale = (jnp.maximum(amax, 1e-8) / 127.0).astype(jnp.float32)
        w_q = jnp.clip(jnp.round(w_f32 / scale), -127.0, 127.0).astype(jnp.int8)
        if kp != k_in:
            w_q = jnp.pad(w_q, ((0, kp - k_in), (0, 0)))
        w_store, scale = w_q, scale.reshape(1, n_out)
    elif weight_format == "plain":
        w_store = w_kn.astype(compute_dtype)
        if kp != k_in:
            w_store = jnp.pad(w_store, ((0, kp - k_in), (0, 0)))
        scale = None
    else:
        raise ValueError(f"unknown weight_format: {weight_format!r}")

    bias_f32 = None if bias is None else jnp.asarray(bias, jnp.float32).reshape(1, n_out)
    return w_store, scale, bias_f32


@functools.partial(jax.jit, static_argnames=("tm", "tn", "tk"))
def quantized_linear_forward(x, w, scale=None, bias=None, *, tm=None, tn=None, tk=None):
    """Pallas implementation of QuantizedLinear.forward (quant_flag=False).

    x:     [..., K]               (any leading dims; flattened to M rows)
    w:     [Kp, N]                pre-transposed (+K-padded) via prepare_linear_params
    scale: [1, N] f32 or None     (required iff w is int8)
    bias:  [1, N] f32 or None
    returns [..., N] in x.dtype
    """
    orig_shape = x.shape
    K = orig_shape[-1]
    M = 1
    for d in orig_shape[:-1]:
        M *= d
    Kp, N = w.shape
    assert Kp >= K, f"weight K(padded)={Kp} < x K={K}"

    out_dtype = x.dtype
    is_int8 = jnp.dtype(w.dtype) == jnp.dtype(jnp.int8)
    if is_int8 and scale is None:
        raise ValueError("int8 weight requires a per-output-channel scale")
    compute_dtype = jnp.bfloat16 if is_int8 else w.dtype

    # ---- tile selection ---------------------------------------------------
    sub_mult = max(_sublane_multiple(compute_dtype), _sublane_multiple(out_dtype))
    tm = _round_up(min(tm or 512, _round_up(max(M, 1), sub_mult)), sub_mult)
    tn = min(_round_up(tn or 1024, 128), _round_up(N, 128))

    # tk: largest multiple of 128 <= preference that divides Kp (else one full-K block).
    tk_pref = min(_round_up(tk or 512, 128), Kp) if Kp >= 128 else Kp
    tk_sel = None
    if Kp % 128 == 0:
        cand = (tk_pref // 128) * 128
        while cand >= 128:
            if Kp % cand == 0:
                tk_sel = cand
                break
            cand -= 128
    tk = tk_sel if tk_sel is not None else Kp

    m_grid, n_grid, k_grid = _cdiv(M, tm), _cdiv(N, tn), Kp // tk

    # v7x has 2 TensorCores: guarantee >= 2 parallel blocks when the problem allows.
    if m_grid * n_grid < 2:
        if N > 128:
            tn = _round_up(_cdiv(N, 2), 128)
            n_grid = _cdiv(N, tn)
        elif M > sub_mult:
            tm = _round_up(_cdiv(M, 2), sub_mult)
            m_grid = _cdiv(M, tm)

    # ---- operands -----------------------------------------------------------
    x2d = x.reshape(M, K).astype(compute_dtype)
    if Kp != K:
        # Only the reduction axis needs zero padding for correctness (weight was K-padded
        # once at load time); partial M/N edge blocks are handled by masked stores.
        x2d = jnp.pad(x2d, ((0, 0), (0, Kp - K)))

    inputs = [x2d, w]
    if scale is not None:
        inputs.append(jnp.asarray(scale, jnp.float32).reshape(1, N))
    if bias is not None:
        inputs.append(jnp.asarray(bias, jnp.float32).reshape(1, N))

    # Put the larger parallel axis first so both v7x TCs get work; reduction axis last.
    if n_grid >= m_grid:
        grid = (n_grid, m_grid, k_grid)
        x_map = lambda n, m, k: (m, k)
        w_map = lambda n, m, k: (k, n)
        v_map = lambda n, m, k: (0, n)
        o_map = lambda n, m, k: (m, n)
    else:
        grid = (m_grid, n_grid, k_grid)
        x_map = lambda m, n, k: (m, k)
        w_map = lambda m, n, k: (k, n)
        v_map = lambda m, n, k: (0, n)
        o_map = lambda m, n, k: (m, n)

    # ---- VMEM budget & pipelining depth -------------------------------------
    xb = jnp.dtype(compute_dtype).itemsize
    wb = jnp.dtype(w.dtype).itemsize
    ob = jnp.dtype(out_dtype).itemsize

    def _vmem_bytes(w_buffers):
        b = 2 * tm * tk * xb + w_buffers * tk * tn * wb + 2 * tm * tn * ob + tm * tn * 4
        if scale is not None:
            b += 2 * tn * 4
        if bias is not None:
            b += 2 * tn * 4
        return b

    vmem_cap = int(_vmem_capacity_bytes() * 0.625)  # ~40 MiB on v7x, ~80 MiB on v5e/v6e
    w_buffers = 3 if (k_grid >= 3 and hasattr(pl, "Buffered")
                      and 2 * _vmem_bytes(3) <= vmem_cap) else 2
    vmem_limit = int(min(max(2 * _vmem_bytes(w_buffers), 16 * 1024 * 1024), vmem_cap))

    if w_buffers > 2:
        try:
            w_spec = pl.BlockSpec((tk, tn), w_map, pipeline_mode=pl.Buffered(w_buffers))
        except TypeError:
            w_spec = pl.BlockSpec((tk, tn), w_map)
    else:
        w_spec = pl.BlockSpec((tk, tn), w_map)

    in_specs = [pl.BlockSpec((tm, tk), x_map), w_spec]
    if scale is not None:
        in_specs.append(pl.BlockSpec((1, tn), v_map))
    if bias is not None:
        in_specs.append(pl.BlockSpec((1, tn), v_map))

    try:
        cost = pl.CostEstimate(
            flops=2 * M * N * K,
            transcendentals=0,
            bytes_accessed=int(M * Kp * xb * n_grid + Kp * N * wb * m_grid + M * N * ob),
        )
    except Exception:
        cost = None

    out = pl.pallas_call(
        _make_linear_kernel(scale is not None, bias is not None),
        out_shape=jax.ShapeDtypeStruct((M, N), out_dtype),
        grid_spec=pltpu.PrefetchScalarGridSpec(
            num_scalar_prefetch=0,
            grid=grid,
            in_specs=in_specs,
            out_specs=pl.BlockSpec((tm, tn), o_map),
            scratch_shapes=[pltpu.VMEM((tm, tn), jnp.float32)],
        ),
        compiler_params=pltpu.CompilerParams(
            dimension_semantics=("parallel", "parallel", "arbitrary"),
            vmem_limit_bytes=vmem_limit,
        ),
        cost_estimate=cost,
    )(*inputs)

    return out.reshape(*orig_shape[:-1], N)


if __name__ == "__main__":
    # Small shapes consistent with a Linear layer: batch=2, seq=8,
    # in_features=128, out_features=256.
    batch, seq, in_features, out_features = 2, 8, 128, 256

    key = jax.random.PRNGKey(0)
    kx, kw, kb, kx2, kw2, kb2 = jax.random.split(key, 6)

    x = jax.random.normal(kx, (batch, seq, in_features), dtype=jnp.float32)
    # Deterministic "checkpoint" parameters (synthetic), PyTorch layout [N, K].
    weight = jax.random.normal(kw, (out_features, in_features), dtype=jnp.float32) * 0.02
    bias = jax.random.normal(kb, (out_features,), dtype=jnp.float32) * 0.1

    ref = x @ weight.T + bias.reshape(1, 1, -1)

    # 1) default path: bf16 MXU compute, f32 accumulate, f32 bias, single cast.
    w_bf16, no_scale, bias_f32 = prepare_linear_params(weight, bias)
    out = jax.block_until_ready(quantized_linear_forward(x, w_bf16, no_scale, bias_f32))
    assert out.shape == (batch, seq, out_features)
    assert out.dtype == x.dtype
    assert jnp.allclose(out, ref, atol=1.5e-2, rtol=1.5e-2), "bf16 path mismatch vs reference"

    # 2) no-bias specialized kernel.
    out_nb = jax.block_until_ready(quantized_linear_forward(x, w_bf16))
    assert jnp.allclose(out_nb, x @ weight.T, atol=1.5e-2, rtol=1.5e-2), "no-bias path mismatch"

    # 3) int8 weight-storage path (per-output-channel scale applied on the f32 accumulator).
    w_i8, scale_i8, bias_i8 = prepare_linear_params(weight, bias, weight_format="int8")
    out_q = jax.block_until_ready(quantized_linear_forward(x, w_i8, scale_i8, bias_i8))
    assert jnp.allclose(out_q, ref, atol=4e-2, rtol=4e-2), "int8 path mismatch vs reference"

    # 4) ragged shapes: K=100 (K-padded weight + per-call x K-pad), N=200 (masked edge blocks).
    in2, out2 = 100, 200
    x2 = jax.random.normal(kx2, (batch, seq, in2), dtype=jnp.float32)
    weight2 = jax.random.normal(kw2, (out2, in2), dtype=jnp.float32) * 0.02
    bias2 = jax.random.normal(kb2, (out2,), dtype=jnp.float32) * 0.1
    w2, _, b2 = prepare_linear_params(weight2, bias2)
    out2_ = jax.block_until_ready(quantized_linear_forward(x2, w2, None, b2))
    ref2 = x2 @ weight2.T + bias2.reshape(1, 1, -1)
    assert out2_.shape == (batch, seq, out2)
    assert jnp.allclose(out2_, ref2, atol=1.5e-2, rtol=1.5e-2), "ragged-shape path mismatch"

    print("KERNEL_OK")
</pallas_src>

<mosaic_0001>
module attributes {stable_mosaic.version = 11 : i64} {
  func.func @kernel(%arg0: i32, %arg1: i32, %arg2: i32, %arg3: memref<16x128xbf16, #tpu.memory_space<vmem>>, %arg4: memref<128x128xbf16, #tpu.memory_space<vmem>>, %arg5: memref<1x128xf32, #tpu.memory_space<vmem>>, %arg6: memref<16x128xf32, #tpu.memory_space<vmem>>, %arg7: memref<16x128xf32, #tpu.memory_space<vmem>>) attributes {dimension_semantics = [#tpu.dimension_semantics<parallel>, #tpu.dimension_semantics<parallel>, #tpu.dimension_semantics<arbitrary>], iteration_bounds = array<i64: 2, 1, 1>, scalar_prefetch = 0 : i64, scratch_operands = 1 : i64, tpu.core_type = #tpu.core_type<tc>, window_params = [{transform_indices = @transform_0, window_bounds = array<i64: 16, 128>}, {transform_indices = @transform_1, window_bounds = array<i64: 128, 128>}, {transform_indices = @transform_2, window_bounds = array<i64: 1, 128>}, {transform_indices = @transform_3, window_bounds = array<i64: 16, 128>}]} {
    %c0_i32 = arith.constant 0 : i32
    %0 = arith.cmpi eq, %arg2, %c0_i32 : i32
    %1 = arith.extui %0 : i1 to i32
    %c0_i32_0 = arith.constant 0 : i32
    %2 = arith.cmpi ne, %1, %c0_i32_0 : i32
    scf.if %2 {
      %cst_10 = arith.constant 0.000000e+00 : f32
      %12 = vector.broadcast %cst_10 : f32 to vector<16x128xf32>
      %c0_11 = arith.constant 0 : index
      %c0_12 = arith.constant 0 : index
      %13 = vector.load %arg7[%c0_11, %c0_12] : memref<16x128xf32, #tpu.memory_space<vmem>>, vector<16x128xf32>
      tpu.vector_store %arg7[%c0_11, %c0_12], %12 {strides = array<i32>} : memref<16x128xf32, #tpu.memory_space<vmem>>, vector<16x128xf32>,
    } else {
    }
    %c0 = arith.constant 0 : index
    %c0_1 = arith.constant 0 : index
    %3 = vector.load %arg4[%c0, %c0_1] : memref<128x128xbf16, #tpu.memory_space<vmem>>, vector<128x128xbf16>
    %c0_2 = arith.constant 0 : index
    %c0_3 = arith.constant 0 : index
    %4 = vector.load %arg7[%c0_2, %c0_3] : memref<16x128xf32, #tpu.memory_space<vmem>>, vector<16x128xf32>
    %c0_4 = arith.constant 0 : index
    %c0_5 = arith.constant 0 : index
    %5 = vector.load %arg3[%c0_4, %c0_5] : memref<16x128xbf16, #tpu.memory_space<vmem>>, vector<16x128xbf16>
    %cst = arith.constant dense<0.000000e+00> : vector<16x128xf32>
    %6 = tpu.matmul %5, %3, %cst {dimension_numbers = #tpu.dot_dimension_numbers<[1], [0], [0], [1], [0, 0, 1, 1], [], []>} : vector<16x128xbf16>, vector<128x128xbf16>, vector<16x128xf32> -> vector<16x128xf32>
    %7 = arith.addf %4, %6 : vector<16x128xf32>
    %c0_6 = arith.constant 0 : index
    %c0_7 = arith.constant 0 : index
    %8 = vector.load %arg7[%c0_6, %c0_7] : memref<16x128xf32, #tpu.memory_space<vmem>>, vector<16x128xf32>
    tpu.vector_store %arg7[%c0_6, %c0_7], %7 {strides = array<i32>} : memref<16x128xf32, #tpu.memory_space<vmem>>, vector<16x128xf32>,
    %c0_i32_8 = arith.constant 0 : i32
    %9 = arith.cmpi eq, %arg2, %c0_i32_8 : i32
    %10 = arith.extui %9 : i1 to i32
    %c0_i32_9 = arith.constant 0 : i32
    %11 = arith.cmpi ne, %10, %c0_i32_9 : i32
    scf.if %11 {
      %c0_10 = arith.constant 0 : index
      %c0_11 = arith.constant 0 : index
      %12 = vector.load %arg7[%c0_10, %c0_11] : memref<16x128xf32, #tpu.memory_space<vmem>>, vector<16x128xf32>
      %c0_12 = arith.constant 0 : index
      %c0_13 = arith.constant 0 : index
      %13 = vector.load %arg5[%c0_12, %c0_13] : memref<1x128xf32, #tpu.memory_space<vmem>>, vector<1x128xf32>
      %14 = vector.broadcast %13 : vector<1x128xf32> to vector<16x128xf32>
      %15 = arith.addf %12, %14 : vector<16x128xf32>
      %c0_14 = arith.constant 0 : index
      %c0_15 = arith.constant 0 : index
      %16 = vector.load %arg6[%c0_14, %c0_15] : memref<16x128xf32, #tpu.memory_space<vmem>>, vector<16x128xf32>
      tpu.vector_store %arg6[%c0_14, %c0_15], %15 {strides = array<i32>} : memref<16x128xf32, #tpu.memory_space<vmem>>, vector<16x128xf32>,
    } else {
    }
    return
  }
  func.func @transform_0(%arg0: i32, %arg1: i32, %arg2: i32) -> (i32, i32) {
    %c0_i32 = arith.constant 0 : i32
    return %arg1, %arg2 : i32, i32
  }
  func.func @transform_1(%arg0: i32, %arg1: i32, %arg2: i32) -> (i32, i32) {
    %c0_i32 = arith.constant 0 : i32
    return %arg2, %arg0 : i32, i32
  }
  func.func @transform_2(%arg0: i32, %arg1: i32, %arg2: i32) -> (i32, i32) {
    %c0_i32 = arith.constant 0 : i32
    %c0_i32_0 = arith.constant 0 : i32
    return %c0_i32, %arg0 : i32, i32
  }
  func.func @transform_3(%arg0: i32, %arg1: i32, %arg2: i32) -> (i32, i32) {
    %c0_i32 = arith.constant 0 : i32
    return %arg1, %arg0 : i32, i32
  }
}

</mosaic_0001>

<llo_original>
// kernel: quantized_linear_forward.1
$region0: #{quantized_linear_forward.1}
  #allocation0 [shape = 'u32[]', space=smem, size = 0x4, offset = 0x4, fixed_abs, tag = 'smem constant byte address 0x4 - core index']
  #allocation1 [shape = 'u32[144,128]{1,0:T(1,128)}', space=vmem, size = 0x12000, scoped, tag = 'internal scratch']
  #allocation2 [shape = 'f32[16,128]{1,0:T(8,128)}', space=vmem, size = 0x2000, scoped, tag = 'scratch operand']
  %s0 = inlined_call_operand.vmem [shape: bf16[16,128], index: 0, kind: input, shape index: {}]
  %s1 = inlined_call_operand.hbm [shape: bf16[128,256], index: 1, kind: input, shape index: {}]
  %s2 = inlined_call_operand.vmem [shape: f32[1,256], index: 2, kind: input, shape index: {}]
  %s3 = inlined_call_operand.hbm [shape: f32[16,256], index: 3, kind: output, shape index: {}]
  %s4 = sld [smem:[#allocation0]]
  $region57: #{quantized_linear_forward.1} parent=0
    _
  %s6 = ssub.s32 1, %s4
  %s7 = scalar_select 0, %s6, %s4
  $region1: #{quantized_linear_forward.1} parent=0
    #allocation3 [shape = 'u8[65536]{0}', space=vmem, size = 0x10000, scoped, tag = 'input window, operand 1']
    #allocation4 [shape = 's32[2]{0}', space=sflag, size = 0x8, scoped, tag = 'scoped memory for quantized_linear_forward.1']
    #allocation5 [shape = 's32[2]{0}', space=sflag, size = 0x8, scoped, tag = 'scoped memory for quantized_linear_forward.1']
    #allocation6 [shape = 'u8[16384]{0}', space=vmem, size = 0x4000, scoped, tag = 'output window, operand 0']
    %8 = vsyncpa [#allocation4], 0
    %s9 = scalar_lea.sflag [#allocation4], 1
    %10 = vsyncpa %s9, 0
    %11 = vsyncpa [#allocation5], 0
    %s12 = scalar_lea.sflag [#allocation5], 1
    %13 = vsyncpa %s12, 0
    loop: start=0, step=1, limit=4
    $region2: #{quantized_linear_forward.1} parent=1 // loop_pre_header
      _
    $region3: #{quantized_linear_forward.1} parent=1 // loop_header
      %s15 = sphi 0, %s19
      %p16 = scmp.ge.s32.totalorder %s15, 4
      %s22 = sphi 0, %s41
      %s23 = sphi 0, %s37
      %s24 = sphi 0, %s33
      %s25 = sphi 0, %s22
      %s26 = sphi 0, %s23
      %s27 = sphi 0, %s24
      %s28 = sphi 0, %s25
      %s29 = sphi 0, %s26
      %s30 = sphi 0, %s27
      %s46 = sphi 0, %s48
      %s49 = sphi 0, %s46
      %s50 = sphi 0, %s49
      %s66 = sphi 0, %s50
      %s74 = sphi 0, %s76
      %s77 = sphi 0, %s74
      %s78 = sphi 0, %s77
      %s94 = sphi 0, %s78
      %s100 = sphi 0, %s102
      %s103 = sphi 0, %s100
      %s104 = sphi 0, %s103
      %s120 = sphi 0, %s104
      %s128 = sphi 0, %s130
      %s131 = sphi 0, %s128
      %s132 = sphi 0, %s131
      %s148 = sphi 0, %s132
    $region4: #{quantized_linear_forward.1} parent=1 // loop_header_branch
      %18 = sbr.rel (%p16) target = $region8
    $region5: #{quantized_linear_forward.1} parent=1 // loop_body
      %s20 = ssub.s32 %s15, 1
      %s21 = ssub.s32 %s15, 2
      %s31 = sadd.s32 1, %s24
      %p32 = scmp.ge.s32.totalorder %s31, 1
      %s33 = scalar_select %p32, 0, %s31
      %s34 = sadd.s32 1, %s23
      %s35 = scalar_select %p32, %s34, %s23
      %p36 = scmp.ge.s32.totalorder %s35, 1
      %s37 = scalar_select %p36, 0, %s35
      %s38 = sadd.s32 1, %s22
      %s39 = scalar_select %p36, %s38, %s22
      %p40 = scmp.ge.s32.totalorder %s39, 2
      %s41 = scalar_select %p40, 0, %s39
      %s42 = ssub.s32 %s23, %s37
      %s43 = ssub.s32 %s24, %s33
      %s44 = sor.u32 %s42, %s43
      %p45 = scmp.eq.s32.totalorder %s44, 0
      %s47 = sadd.s32 %s46, 1
      %s48 = scalar_select %p45, %s46, %s47
      %p51 = pneg %p45
      %p52 = scmp.eq.s32.totalorder %s15, 1
      %p53 = por %p51, %p52
      %p54 = scmp.ne.s32.totalorder %s46, %s49
      %p55 = scmp.eq.s32.totalorder %s15, 0
      %p56 = por %p54, %p55
      %p57 = scmp.ne.s32.totalorder %s46, %s49
      %p58 = scmp.eq.s32.totalorder %s20, 1
      %p59 = por %p57, %p58
      %p60 = scmp.ne.s32.totalorder %s49, %s50
      %p61 = scmp.eq.s32.totalorder %s20, 0
      %p62 = por %p60, %p61
      %p63 = scmp.ne.s32.totalorder %s49, %s50
      %p64 = scmp.eq.s32.totalorder %s21, 1
      %p65 = por %p63, %p64
      %p67 = scmp.ne.s32.totalorder %s50, %s66
      %p68 = scmp.eq.s32.totalorder %s21, 0
      %p69 = por %p67, %p68
      %s70 = ssub.s32 %s24, %s33
      %s71 = ssub.s32 %s22, %s41
      %s72 = sor.u32 %s70, %s71
      %p73 = scmp.eq.s32.totalorder %s72, 0
      %s75 = sadd.s32 %s74, 1
      %s76 = scalar_select %p73, %s74, %s75
      %p79 = pneg %p73
      %p80 = scmp.eq.s32.totalorder %s15, 1
      %p81 = por %p79, %p80
      %p82 = scmp.ne.s32.totalorder %s74, %s77
      %p83 = scmp.eq.s32.totalorder %s15, 0
      %p84 = por %p82, %p83
      %p85 = scmp.ne.s32.totalorder %s74, %s77
      %p86 = scmp.eq.s32.totalorder %s20, 1
      %p87 = por %p85, %p86
      %p88 = scmp.ne.s32.totalorder %s77, %s78
      %p89 = scmp.eq.s32.totalorder %s20, 0
      %p90 = por %p88, %p89
      %p91 = scmp.ne.s32.totalorder %s77, %s78
      %p92 = scmp.eq.s32.totalorder %s21, 1
      %p93 = por %p91, %p92
      %p95 = scmp.ne.s32.totalorder %s78, %s94
      %p96 = scmp.eq.s32.totalorder %s21, 0
      %p97 = por %p95, %p96
      %s98 = ssub.s32 %s22, %s41
      %p99 = scmp.eq.s32.totalorder %s98, 0
      %s101 = sadd.s32 %s100, 1
      %s102 = scalar_select %p99, %s100, %s101
      %p105 = pneg %p99
      %p106 = scmp.eq.s32.totalorder %s15, 1
      %p107 = por %p105, %p106
      %p108 = scmp.ne.s32.totalorder %s100, %s103
      %p109 = scmp.eq.s32.totalorder %s15, 0
      %p110 = por %p108, %p109
      %p111 = scmp.ne.s32.totalorder %s100, %s103
      %p112 = scmp.eq.s32.totalorder %s20, 1
      %p113 = por %p111, %p112
      %p114 = scmp.ne.s32.totalorder %s103, %s104
      %p115 = scmp.eq.s32.totalorder %s20, 0
      %p116 = por %p114, %p115
      %p117 = scmp.ne.s32.totalorder %s103, %s104
      %p118 = scmp.eq.s32.totalorder %s21, 1
      %p119 = por %p117, %p118
      %p121 = scmp.ne.s32.totalorder %s104, %s120
      %p122 = scmp.eq.s32.totalorder %s21, 0
      %p123 = por %p121, %p122
      %s124 = ssub.s32 %s23, %s37
      %s125 = ssub.s32 %s22, %s41
      %s126 = sor.u32 %s124, %s125
      %p127 = scmp.eq.s32.totalorder %s126, 0
      %s129 = sadd.s32 %s128, 1
      %s130 = scalar_select %p127, %s128, %s129
      %p133 = pneg %p127
      %p134 = scmp.eq.s32.totalorder %s15, 1
      %p135 = por %p133, %p134
      %p136 = scmp.ne.s32.totalorder %s128, %s131
      %p137 = scmp.eq.s32.totalorder %s15, 0
      %p138 = por %p136, %p137
      %p139 = scmp.ne.s32.totalorder %s128, %s131
      %p140 = scmp.eq.s32.totalorder %s20, 1
      %p141 = por %p139, %p140
      %p142 = scmp.ne.s32.totalorder %s131, %s132
      %p143 = scmp.eq.s32.totalorder %s20, 0
      %p144 = por %p142, %p143
      %p145 = scmp.ne.s32.totalorder %s131, %s132
      %p146 = scmp.eq.s32.totalorder %s21, 1
      %p147 = por %p145, %p146
      %p149 = scmp.ne.s32.totalorder %s132, %s148
      %p150 = scmp.eq.s32.totalorder %s21, 0
      %p151 = por %p149, %p150
      %p152 = scmp.le.s32.totalorder 1, %s15
      %p153 = scmp.lt.s32.totalorder %s15, 3
      %p154 = pnand %p152, %p153
      %p155 = pneg %p154
      // Predicated region
      $region9: #{quantized_linear_forward.1} parent=5 // pred_check
        _
      $region10: #{quantized_linear_forward.1} parent=5 // pred_check_branch
        %157 = sbr.rel (%p154) target = $region12
      $region11: #{quantized_linear_forward.1} parent=5 // pred_region
        %s158 = ssub.s32 %s15, 1
        // Predicated region
        $region13: #{quantized_linear_forward.1} parent=11 // pred_check
          %p159 = pneg %p62
        $region14: #{quantized_linear_forward.1} parent=11 // pred_check_branch
          %161 = sbr.rel (%p159) target = $region16
        $region15: #{quantized_linear_forward.1} parent=11 // pred_region
          %s162 = smul.u32 2, %s26
          %p163 = scmp.lt.s32.totalorder %s162, 1
          %s164 = scalar_select %p163, %s162, 1
          %p165 = scmp.lt.s32.totalorder %s27, 0
          %s166 = scalar_select %p165, %s27, 0
          %s167 = sadd.s32 %s166, %s164
          %s168 = smul.addr %s167, 4
          %s169 = scalar_lea.vmem %s0, %s168
          %s170 = smul.u32 2, %s26
        $region16: #{quantized_linear_forward.1} parent=11 // pred_fallthru
          _
      $region12: #{quantized_linear_forward.1} parent=5 // pred_fallthru
        _
      %p171 = scmp.lt.s32.totalorder %s15, 2
      // Predicated region
      $region17: #{quantized_linear_forward.1} parent=5 // pred_check
        %p172 = pneg %p171
      $region18: #{quantized_linear_forward.1} parent=5 // pred_check_branch
        %174 = sbr.rel (%p172) target = $region20
      $region19: #{quantized_linear_forward.1} parent=5 // pred_region
        // Predicated region
        $region21: #{quantized_linear_forward.1} parent=19 // pred_check
          %p175 = pneg %p84
        $region22: #{quantized_linear_forward.1} parent=19 // pred_check_branch
          %177 = sbr.rel (%p175) target = $region24
        $region23: #{quantized_linear_forward.1} parent=19 // pred_region
          %s178 = sand.u32 %s74, 1
          %s179 = scalar_lea.sflag [#allocation4], %s178
          %s180 = sand.u32 %s74, 1
          %s181 = smul.addr %s180, 64
          %s182 = scalar_lea.vmem [#allocation3], %s181
          %s183 = smul.u32 16, %s24
          %s185 = ssub.s32 1024, 1024
          %186 = vsyncadd %s179, %s185
          %s187 = smul.addr %s183, 2
          %s188 = sadd.s32 %s22, %s187
          %s189 = smul.addr %s188, 64
          %s190 = scalar_lea.hbm %s1, %s189
          %s191 = sshll.u32 %s182, 4
          %s192 = int_to_ptr.vmem [resolvable:$true] %s191
          %197 = dma.hbm_to_vmem [thread:$0]  %s190, 1024, %s192, %s179, 128, 64, 4
        $region24: #{quantized_linear_forward.1} parent=19 // pred_fallthru
          _
        // Predicated region
        $region25: #{quantized_linear_forward.1} parent=19 // pred_check
          %p198 = pneg %p110
        $region26: #{quantized_linear_forward.1} parent=19 // pred_check_branch
          %200 = sbr.rel (%p198) target = $region28
        $region27: #{quantized_linear_forward.1} parent=19 // pred_region
          %p201 = scmp.lt.s32.totalorder %s22, 1
          %s202 = scalar_select %p201, %s22, 1
          %s203 = scalar_lea.vmem %s2, %s202
        $region28: #{quantized_linear_forward.1} parent=19 // pred_fallthru
          _
      $region20: #{quantized_linear_forward.1} parent=5 // pred_fallthru
        _
      %p204 = scmp.le.s32.totalorder 1, %s15
      %p205 = scmp.lt.s32.totalorder %s15, 3
      %p206 = pnand %p204, %p205
      %p207 = pneg %p206
      // Predicated region
      $region29: #{quantized_linear_forward.1} parent=5 // pred_check
        _
      $region30: #{quantized_linear_forward.1} parent=5 // pred_check_branch
        %209 = sbr.rel (%p206) target = $region32
      $region31: #{quantized_linear_forward.1} parent=5 // pred_region
        %s210 = ssub.s32 %s15, 1
        %s211 = sand.u32 %s77, 1
        %s212 = scalar_lea.sflag [#allocation4], %s211
        %s213 = sand.u32 %s77, 1
        %s214 = smul.addr %s213, 64
        %s215 = scalar_lea.vmem [#allocation3], %s214
        // Predicated region
        $region33: #{quantized_linear_forward.1} parent=31 // pred_check
          %p216 = pneg %p90
        $region34: #{quantized_linear_forward.1} parent=31 // pred_check_branch
          %218 = sbr.rel (%p216) target = $region36
        $region35: #{quantized_linear_forward.1} parent=31 // pred_region
          %219 = dma.done %s212, 1024
        $region36: #{quantized_linear_forward.1} parent=31 // pred_fallthru
          _
        %s220 = smul.u32 2, %s26
        %p221 = scmp.lt.s32.totalorder %s220, 1
        %s222 = scalar_select %p221, %s220, 1
        %p223 = scmp.lt.s32.totalorder %s27, 0
        %s224 = scalar_select %p223, %s27, 0
        %s225 = sadd.s32 %s224, %s222
        %s226 = smul.addr %s225, 4
        %s227 = scalar_lea.vmem %s0, %s226
        %p228 = pneg %p62
        %p229 = pneg %p59
        %s230 = sand.u32 %s77, 1
        %s231 = scalar_lea.sflag [#allocation4], %s230
        %s232 = sand.u32 %s77, 1
        %s233 = smul.addr %s232, 64
        %s234 = scalar_lea.vmem [#allocation3], %s233
        %p235 = pneg %p90
        %p236 = pneg %p87
        %p237 = scmp.lt.s32.totalorder %s25, 1
        %s238 = scalar_select %p237, %s25, 1
        %s239 = scalar_lea.vmem %s2, %s238
        %p240 = pneg %p116
        %p241 = pneg %p113
        %p242 = pneg %p144
        %p243 = pneg %p141
        %s244 = sand.u32 %s131, 1
        %s245 = scalar_lea.sflag [#allocation5], %s244
        %s246 = sand.u32 %s131, 1
        %s247 = smul.addr %s246, 16
        %s248 = scalar_lea.vmem [#allocation6], %s247
        %s249 = smul.u32 2, %s26
        %p250 = scmp.lt.s32.totalorder %s249, 1
        %s251 = scalar_select %p250, %s249, 1
        %p252 = scmp.lt.s32.totalorder %s27, 0
        %s253 = scalar_select %p252, %s27, 0
        %s254 = sadd.s32 %s253, %s251
        %s255 = smul.addr %s254, 4
        %s256 = scalar_lea.vmem %s0, %s255
        %s257 = smul.u32 2, %s26
        %s258 = smul.u32 16, %s27
        %p259 = scmp.lt.s32.totalorder %s25, 1
        %s260 = scalar_select %p259, %s25, 1
        %s261 = scalar_lea.vmem %s2, %s260
        %s262 = smul.u32 2, %s26
        %p264 = scmp.eq.s32.totalorder %s27, 0
        // Predicated region
        $region37: #{quantized_linear_forward.1} parent=31 // pred_check
          %p265 = pneg %p264
        $region38: #{quantized_linear_forward.1} parent=31 // pred_check_branch
          %267 = sbr.rel (%p265) target = $region40
        $region39: #{quantized_linear_forward.1} parent=31 // pred_region
          %268 = vst [vmem:[#allocation2] sm:$0xff] 0.0
          %269 = vst [vmem:[#allocation2 + $0x8] sm:$0xff] 0.0
        $region40: #{quantized_linear_forward.1} parent=31 // pred_fallthru
          _
        %v270 = vld [vmem:[%s215] sm:$0xf]
        %v271 = vld [vmem:[%s215 + $0x4] sm:$0xf]
        %v272 = vld [vmem:[%s215 + $0x8] sm:$0xf]
        %v273 = vld [vmem:[%s215 + $0xc] sm:$0xf]
        %v274 = vld [vmem:[%s215 + $0x10] sm:$0xf]
        %v275 = vld [vmem:[%s215 + $0x14] sm:$0xf]
        %v276 = vld [vmem:[%s215 + $0x18] sm:$0xf]
        %v277 = vld [vmem:[%s215 + $0x1c] sm:$0xf]
        %v278 = vld [vmem:[%s215 + $0x20] sm:$0xf]
        %v279 = vld [vmem:[%s215 + $0x24] sm:$0xf]
        %v280 = vld [vmem:[%s215 + $0x28] sm:$0xf]
        %v281 = vld [vmem:[%s215 + $0x2c] sm:$0xf]
        %v282 = vld [vmem:[%s215 + $0x30] sm:$0xf]
        %v283 = vld [vmem:[%s215 + $0x34] sm:$0xf]
        %v284 = vld [vmem:[%s215 + $0x38] sm:$0xf]
        %v285 = vld [vmem:[%s215 + $0x3c] sm:$0xf]
        %v286 = vld [vmem:[#allocation2] sm:$0xff]
        %v287 = vld [vmem:[#allocation2 + $0x8] sm:$0xff]
        %v288 = vld [vmem:[%s256] sm:$0xf]
        %v289 = vld [vmem:[%s256 + $0x4] sm:$0xf]
        %v292 = vunpack.c.l.b16 %v288
        %v293 = vunpack.c.l.b16 %v289
        %v294 = vpack.c.b16 %v293, %v292
        %v312 = vunpack.c.l.b16 %v270
        %v313 = vunpack.c.l.b16 %v271
        %v314 = vunpack.c.l.b16 %v272
        %v315 = vunpack.c.l.b16 %v273
        %v316 = vunpack.c.l.b16 %v274
        %v317 = vunpack.c.l.b16 %v275
        %v318 = vunpack.c.l.b16 %v276
        %v319 = vunpack.c.l.b16 %v277
        %v320 = vunpack.c.l.b16 %v278
        %v321 = vunpack.c.l.b16 %v279
        %v322 = vunpack.c.l.b16 %v280
        %v323 = vunpack.c.l.b16 %v281
        %v324 = vunpack.c.l.b16 %v282
        %v325 = vunpack.c.l.b16 %v283
        %v326 = vunpack.c.l.b16 %v284
        %v327 = vunpack.c.l.b16 %v285
        %v328 = vpack.c.b16 %v313, %v312
        %v329 = vpack.c.b16 %v315, %v314
        %v330 = vpack.c.b16 %v317, %v316
        %v331 = vpack.c.b16 %v319, %v318
        %v332 = vpack.c.b16 %v321, %v320
        %v333 = vpack.c.b16 %v323, %v322
        %v334 = vpack.c.b16 %v325, %v324
        %v335 = vpack.c.b16 %v327, %v326
        %344 = vmatprep.subr.bf16.mxu0 0
        %345 = vmatpush1.bf16.msra.mxu0 %v328
        %346 = vmatprep.subr.bf16.mxu0 0
        %347 = vmatpush1.bf16.msra.mxu0 %v329
        %348 = vmatprep.subr.bf16.mxu0 0
        %349 = vmatpush1.bf16.msra.mxu0 %v330
        %350 = vmatprep.subr.bf16.mxu0 0
        %351 = vmatpush1.bf16.msra.mxu0 %v331
        %352 = vmatprep.subr.bf16.mxu0 0
        %353 = vmatpush1.bf16.msra.mxu0 %v332
        %354 = vmatprep.subr.bf16.mxu0 0
        %355 = vmatpush1.bf16.msra.mxu0 %v333
        %356 = vmatprep.subr.bf16.mxu0 0
        %357 = vmatpush1.bf16.msra.mxu0 %v334
        %358 = vmatprep.subr.bf16.mxu0 0
        %359 = vmatpush1.bf16.msra.mxu0 %v335
        %360 = vmatprep.subr.bf16.mxu0 0
        %361 = vmatpush1.bf16.msra.mxu0 0
        %362 = vmatprep.subr.bf16.mxu0 0
        %363 = vmatpush1.bf16.msra.mxu0 0
        %364 = vmatprep.subr.bf16.mxu0 0
        %365 = vmatpush1.bf16.msra.mxu0 0
        %366 = vmatprep.subr.bf16.mxu0 0
        %367 = vmatpush1.bf16.msra.mxu0 0
        %368 = vmatprep.subr.bf16.mxu0 0
        %369 = vmatpush1.bf16.msra.mxu0 0
        %370 = vmatprep.subr.bf16.mxu0 0
        %371 = vmatpush1.bf16.msra.mxu0 0
        %372 = vmatprep.subr.bf16.mxu0 0
        %373 = vmatpush1.bf16.msra.mxu0 0
        %374 = vmatprep.subr.bf16.mxu0 0
        %375 = vmatpush1.bf16.msra.mxu0 0
        %376 = vmatprep.mubr.bf16.mxu0 0
        %377 = vmatmul.mubr.bf16.gmra.mrb[0].mxu0 %v294
        %v378 = vpop.f32.mrb[0].mxu0
        %v379 = vadd.f32 0.0, %v378
        %v380 = vpop.f32.mrb[0].mxu0
        %v381 = vpop.f32.mrb[0].mxu0
        %v382 = vadd.f32 0.0, %v381
        %v383 = vpop.f32.mrb[0].mxu0
        %384 = vdwg.mxu0
        %v385 = vadd.f32 %v286, %v379
        %v386 = vadd.f32 %v287, %v382
        %387 = vst [vmem:[#allocation2] sm:$0xff] %v385
        %388 = vst [vmem:[#allocation2 + $0x8] sm:$0xff] %v386
        // Predicated region
        $region41: #{quantized_linear_forward.1} parent=31 // pred_check
          %p389 = pneg %p264
        $region42: #{quantized_linear_forward.1} parent=31 // pred_check_branch
          %391 = sbr.rel (%p389) target = $region44
        $region43: #{quantized_linear_forward.1} parent=31 // pred_region
          %v392 = vld [vmem:[#allocation2] sm:$0xff]
          %v393 = vld [vmem:[#allocation2 + $0x8] sm:$0xff]
          %v394 = vld [vmem:[%s261] sm:$0x1]
          %v396 = vlaneseq
          %v397 = vshrl.u32 %v396, 7
          %v398 = vsub.s32 0, %v397
          %v399 = vrot.slane %v394, %v398
          %v401 = vadd.f32 %v392, %v399
          %v402 = vadd.f32 %v393, %v399
          %403 = vst [vmem:[%s248] sm:$0xff] %v401
          %404 = vst [vmem:[%s248 + $0x8] sm:$0xff] %v402
        $region44: #{quantized_linear_forward.1} parent=31 // pred_fallthru
          _
        %s405 = sand.u32 %s131, 1
        %s406 = scalar_lea.sflag [#allocation5], %s405
        %s407 = sand.u32 %s131, 1
        %s408 = smul.addr %s407, 16
        %s409 = scalar_lea.vmem [#allocation6], %s408
        // Predicated region
        $region45: #{quantized_linear_forward.1} parent=31 // pred_check
          %p410 = pneg %p141
        $region46: #{quantized_linear_forward.1} parent=31 // pred_check_branch
          %412 = sbr.rel (%p410) target = $region48
        $region47: #{quantized_linear_forward.1} parent=31 // pred_region
          %s413 = smul.u32 2, %s26
          %s415 = ssub.s32 256, 256
          %416 = vsyncadd %s406, %s415
          %s417 = smul.addr %s413, 2
          %s418 = sadd.s32 %s25, %s417
          %s419 = smul.addr %s418, 128
          %s420 = scalar_lea.hbm %s3, %s419
          %s421 = sshll.u32 %s409, 4
          %s422 = int_to_ptr.vmem [resolvable:$true] %s421
          %427 = dma.vmem_to_hbm [thread:$0]  %s422, 256, %s420, %s406, 128, 256, 8
        $region48: #{quantized_linear_forward.1} parent=31 // pred_fallthru
          _
      $region32: #{quantized_linear_forward.1} parent=5 // pred_fallthru
        _
      %p428 = scmp.le.s32.totalorder 2, %s15
      // Predicated region
      $region49: #{quantized_linear_forward.1} parent=5 // pred_check
        %p429 = pneg %p428
      $region50: #{quantized_linear_forward.1} parent=5 // pred_check_branch
        %431 = sbr.rel (%p429) target = $region52
      $region51: #{quantized_linear_forward.1} parent=5 // pred_region
        %s432 = ssub.s32 %s15, 2
        // Predicated region
        $region53: #{quantized_linear_forward.1} parent=51 // pred_check
          %p433 = pneg %p147
        $region54: #{quantized_linear_forward.1} parent=51 // pred_check_branch
          %435 = sbr.rel (%p433) target = $region56
        $region55: #{quantized_linear_forward.1} parent=51 // pred_region
          %s436 = sand.u32 %s132, 1
          %s437 = scalar_lea.sflag [#allocation5], %s436
          %s438 = sand.u32 %s132, 1
          %s439 = smul.addr %s438, 16
          %s440 = scalar_lea.vmem [#allocation6], %s439
          %441 = dma.done %s437, 256
        $region56: #{quantized_linear_forward.1} parent=51 // pred_fallthru
          _
      $region52: #{quantized_linear_forward.1} parent=5 // pred_fallthru
        _
    $region6: #{quantized_linear_forward.1} parent=1 // loop_footer
      %s19 = sadd.s32 1, %s15
    $region7: #{quantized_linear_forward.1} parent=1 // loop_footer_branch
      %14 = sbr.rel target = $region3
    $region8: #{quantized_linear_forward.1} parent=1 // loop_exit
      _
    %442 = vsyncpa [#allocation4], 1
    %s443 = scalar_lea.sflag [#allocation4], 1
    %444 = vsyncpa %s443, 1
    %445 = vsyncpa [#allocation5], 1
    %s446 = scalar_lea.sflag [#allocation5], 1
    %447 = vsyncpa %s446, 1

</llo_original>
